<compile_context>
chip_gen: v7x
topology: tpu7x:2x2x1
jax: 0.10.0
libtpu: 0.0.40
codegen_flags: <defaults>
</compile_context>

<pallas_src>
import functools

import jax
import jax.numpy as jnp
from jax.experimental import pallas as pl
from jax.experimental.pallas import tpu as pltpu


def _sublane_multiple(dtype) -> int:
    # Second-to-last-dim tiling granularity: 8 rows for 32-bit, 16 for 16-bit,
    # 32 for 8-bit dtypes (sub-32-bit types pack along sublanes).
    itemsize = jnp.dtype(dtype).itemsize
    return 8 * max(1, 4 // itemsize)


def _pick_s_tile(S: int, dtype) -> int:
    """Largest 'nice' row tile: ~128 rows, divides S, dtype-aligned, >=2 steps."""
    sub = _sublane_multiple(dtype)
    for ts in (128, 64, 32, 16, 8):
        if ts % sub == 0 and S % ts == 0 and S // ts >= 2:
            return ts
    return S  # fall back to a single full-S block


def _add_pos_kernel(x_ref, pos_ref, o_ref, *, s_tile: int):
    # x_ref / o_ref: (s_tile, D) tile of one batch element.
    # pos_ref:       full (S, D) positional table, VMEM-resident for the grid.
    s = pl.program_id(1)
    start = pl.multiple_of(s * s_tile, s_tile)
    pos = pos_ref[pl.ds(start, s_tile), :]
    # Pure VPU broadcast add; the cast is a no-op when dtypes already match.
    o_ref[...] = (x_ref[...] + pos).astype(o_ref.dtype)


def learned_positional_encoding(x, position_embeddings, *, donate_x: bool = False):
    """x: (B, S, D); position_embeddings: (1, S, D). Returns x + pos (broadcast).

    donate_x=True aliases the output onto x's HBM buffer. Only use it when x
    is donated / dead after the call (e.g. under jit with donate_argnums);
    otherwise the caller's x would be clobbered or XLA inserts a defensive copy.
    """
    B, S, D = x.shape
    assert position_embeddings.shape == (1, S, D)
    assert D % 128 == 0, "last dim must be a multiple of 128 (lane-aligned)"

    # Keep all HBM traffic in the activation dtype (bf16 halves the bytes of a
    # purely memory-bound kernel); cast the table once here, not per-tile.
    pos = position_embeddings.astype(x.dtype)

    s_tile = _pick_s_tile(S, x.dtype)
    assert S % s_tile == 0 and s_tile % _sublane_multiple(x.dtype) == 0
    num_s = S // s_tile

    x_spec = pl.BlockSpec((pl.Squeezed(), s_tile, D), lambda b, s: (b, s, 0))
    # Constant block index + single buffer: the table is fetched from HBM once
    # for the whole grid and stays resident; a second buffer is dead weight.
    pos_spec = pl.BlockSpec(
        (pl.Squeezed(), S, D),
        lambda b, s: (0, 0, 0),
        pipeline_mode=pl.Buffered(1),
    )
    out_spec = pl.BlockSpec((pl.Squeezed(), s_tile, D), lambda b, s: (b, s, 0))

    itemsize = jnp.dtype(x.dtype).itemsize
    cost = pl.CostEstimate(
        flops=B * S * D,
        transcendentals=0,
        bytes_accessed=(2 * B * S * D + S * D) * itemsize,
    )

    return pl.pallas_call(
        functools.partial(_add_pos_kernel, s_tile=s_tile),
        out_shape=jax.ShapeDtypeStruct((B, S, D), x.dtype),
        grid=(B, num_s),
        in_specs=[x_spec, pos_spec],
        out_specs=out_spec,
        input_output_aliases=({0: 0} if donate_x else {}),
        cost_estimate=cost,
        compiler_params=pltpu.CompilerParams(
            # Both axes are independent work -> shardable across TCs on v7x.
            dimension_semantics=("parallel", "parallel"),
        ),
    )(x, pos)


if __name__ == "__main__":
    # Shapes implied by the module: the parameter is hard-coded to
    # (1, 256, 1024), so x must be (B, 256, 1024). Small batch.
    B, S, D = 2, 256, 1024

    key = jax.random.PRNGKey(0)
    kx, kp = jax.random.split(key)

    x = jax.random.normal(kx, (B, S, D), dtype=jnp.float32)
    # Module __init__ uses zeros; init with small noise so the add is
    # actually exercised (as a learned parameter after training would be).
    position_embeddings = 0.02 * jax.random.normal(kp, (1, S, D), dtype=jnp.float32)

    # f32 activation path (no aliasing: caller still holds x).
    ref = x + position_embeddings
    out = jax.block_until_ready(learned_positional_encoding(x, position_embeddings))
    assert out.shape == (B, S, D)
    assert out.dtype == x.dtype
    assert jnp.allclose(out, ref, atol=1e-6, rtol=1e-6)

    # bf16 activation path — halves HBM bytes of this memory-bound add.
    x_bf16 = x.astype(jnp.bfloat16)
    out_bf16 = jax.block_until_ready(
        learned_positional_encoding(x_bf16, position_embeddings)
    )
    ref_bf16 = x_bf16 + position_embeddings.astype(jnp.bfloat16)
    assert out_bf16.dtype == jnp.bfloat16
    assert jnp.allclose(
        out_bf16.astype(jnp.float32), ref_bf16.astype(jnp.float32),
        atol=1e-2, rtol=1e-2,
    )

    print("KERNEL_OK")
</pallas_src>

<mosaic_0001>
module attributes {stable_mosaic.version = 11 : i64} {
  func.func @_add_pos_kernel(%arg0: i32, %arg1: i32, %arg2: memref<1x128x1024xf32, #tpu.memory_space<vmem>>, %arg3: memref<1x256x1024xf32, #tpu.memory_space<vmem>>, %arg4: memref<1x128x1024xf32, #tpu.memory_space<vmem>>) attributes {dimension_semantics = [#tpu.dimension_semantics<parallel>, #tpu.dimension_semantics<parallel>], iteration_bounds = array<i64: 2, 2>, scalar_prefetch = 0 : i64, scratch_operands = 0 : i64, tpu.core_type = #tpu.core_type<tc>, window_params = [{transform_indices = @transform_0, window_bounds = array<i64: 1, 128, 1024>}, {pipeline_mode = #tpu.pipeline_mode<synchronous>, transform_indices = @transform_1, window_bounds = array<i64: 1, 256, 1024>}, {transform_indices = @transform_2, window_bounds = array<i64: 1, 128, 1024>}]} {
    %c128_i32 = arith.constant 128 : i32
    %0 = arith.muli %arg1, %c128_i32 : i32
    %1 = tpu.assume_multiple %0, 128 : i32
    %c0 = arith.constant 0 : index
    %2 = arith.index_cast %1 : i32 to index
    %c0_0 = arith.constant 0 : index
    %3 = vector.load %arg3[%c0, %2, %c0_0] : memref<1x256x1024xf32, #tpu.memory_space<vmem>>, vector<1x128x1024xf32>
    %4 = vector.shape_cast %3 : vector<1x128x1024xf32> to vector<128x1024xf32>
    %c0_1 = arith.constant 0 : index
    %c0_2 = arith.constant 0 : index
    %c0_3 = arith.constant 0 : index
    %5 = vector.load %arg2[%c0_1, %c0_2, %c0_3] : memref<1x128x1024xf32, #tpu.memory_space<vmem>>, vector<1x128x1024xf32>
    %6 = vector.shape_cast %5 : vector<1x128x1024xf32> to vector<128x1024xf32>
    %7 = arith.addf %6, %4 : vector<128x1024xf32>
    %c0_4 = arith.constant 0 : index
    %c0_5 = arith.constant 0 : index
    %c0_6 = arith.constant 0 : index
    %8 = vector.load %arg4[%c0_4, %c0_5, %c0_6] : memref<1x128x1024xf32, #tpu.memory_space<vmem>>, vector<1x128x1024xf32>
    %9 = vector.shape_cast %8 : vector<1x128x1024xf32> to vector<128x1024xf32>
    %10 = vector.shape_cast %7 : vector<128x1024xf32> to vector<1x128x1024xf32>
    tpu.vector_store %arg4[%c0_4, %c0_5, %c0_6], %10 {strides = array<i32>} : memref<1x128x1024xf32, #tpu.memory_space<vmem>>, vector<1x128x1024xf32>,
    return
  }
  func.func @transform_0(%arg0: i32, %arg1: i32) -> (i32, i32, i32) {
    %c0_i32 = arith.constant 0 : i32
    %c0_i32_0 = arith.constant 0 : i32
    return %arg0, %arg1, %c0_i32 : i32, i32, i32
  }
  func.func @transform_1(%arg0: i32, %arg1: i32) -> (i32, i32, i32) {
    %c0_i32 = arith.constant 0 : i32
    %c0_i32_0 = arith.constant 0 : i32
    %c0_i32_1 = arith.constant 0 : i32
    %c0_i32_2 = arith.constant 0 : i32
    return %c0_i32, %c0_i32_0, %c0_i32_1 : i32, i32, i32
  }
  func.func @transform_2(%arg0: i32, %arg1: i32) -> (i32, i32, i32) {
    %c0_i32 = arith.constant 0 : i32
    %c0_i32_0 = arith.constant 0 : i32
    return %arg0, %arg1, %c0_i32 : i32, i32, i32
  }
}

</mosaic_0001>

<llo_original>
// kernel: tpu_custom_call.1
$region0: #{tpu_custom_call.1}
  #allocation0 [shape = 'u32[]', space=smem, size = 0x4, offset = 0x4, fixed_abs, tag = 'smem constant byte address 0x4 - core index']
  #allocation1 [shape = 'u32[144,128]{1,0:T(1,128)}', space=vmem, size = 0x12000, scoped, tag = 'internal scratch']
  %s0 = inlined_call_operand.hbm [shape: f32[2,256,1024], index: 0, kind: input, shape index: {}]
  %s1 = inlined_call_operand.hbm [shape: f32[1,256,1024], index: 1, kind: input, shape index: {}]
  %s2 = inlined_call_operand.hbm [shape: f32[2,256,1024], index: 2, kind: output, shape index: {}]
  %s3 = sld [smem:[#allocation0]]
  $region49: #{tpu_custom_call.1} parent=0
    _
  %s5 = ssub.s32 1, %s3
  %s6 = scalar_select 0, %s5, %s3
  $region1: #{tpu_custom_call.1} parent=0
    #allocation2 [shape = 'u8[1048576]{0}', space=vmem, size = 0x100000, scoped, tag = 'input window, operand 0']
    #allocation3 [shape = 's32[2]{0}', space=sflag, size = 0x8, scoped, tag = 'scoped memory for tpu_custom_call.1']
    #allocation4 [shape = 's32[2]{0}', space=sflag, size = 0x8, scoped, tag = 'scoped memory for tpu_custom_call.1']
    #allocation5 [shape = 'u8[1048576]{0}', space=vmem, size = 0x100000, scoped, tag = 'input window, operand 1, single buffered']
    #allocation6 [shape = 's32[1]{0}', space=sflag, size = 0x4, scoped, tag = 'scoped memory for tpu_custom_call.1']
    #allocation7 [shape = 'u8[1048576]{0}', space=vmem, size = 0x100000, scoped, tag = 'output window, operand 0']
    %7 = vsyncpa [#allocation3], 0
    %s8 = scalar_lea.sflag [#allocation3], 1
    %9 = vsyncpa %s8, 0
    %10 = vsyncpa [#allocation6], 0
    %11 = vsyncpa [#allocation4], 0
    %s12 = scalar_lea.sflag [#allocation4], 1
    %13 = vsyncpa %s12, 0
    loop: start=0, step=1, limit=6
    $region2: #{tpu_custom_call.1} parent=1 // loop_pre_header
      _
    $region3: #{tpu_custom_call.1} parent=1 // loop_header
      %s15 = sphi 0, %s19
      %p16 = scmp.ge.s32.totalorder %s15, 6
      %s22 = sphi 0, %s34
      %s23 = sphi 0, %s30
      %s24 = sphi 0, %s22
      %s25 = sphi 0, %s23
      %s26 = sphi 0, %s24
      %s27 = sphi 0, %s25
      %s39 = sphi 0, %s41
      %s42 = sphi 0, %s39
      %s43 = sphi 0, %s42
      %s59 = sphi 0, %s43
      %s63 = sphi 0, %s63
      %s65 = sphi 0, %s63
      %s66 = sphi 0, %s65
      %s80 = sphi 0, %s66
      %s88 = sphi 0, %s90
      %s91 = sphi 0, %s88
      %s92 = sphi 0, %s91
      %s108 = sphi 0, %s92
    $region4: #{tpu_custom_call.1} parent=1 // loop_header_branch
      %18 = sbr.rel (%p16) target = $region8
    $region5: #{tpu_custom_call.1} parent=1 // loop_body
      %s20 = ssub.s32 %s15, 1
      %s21 = ssub.s32 %s15, 2
      %s28 = sadd.s32 1, %s23
      %p29 = scmp.ge.s32.totalorder %s28, 2
      %s30 = scalar_select %p29, 0, %s28
      %s31 = sadd.s32 1, %s22
      %s32 = scalar_select %p29, %s31, %s22
      %p33 = scmp.ge.s32.totalorder %s32, 2
      %s34 = scalar_select %p33, 0, %s32
      %s35 = ssub.s32 %s22, %s34
      %s36 = ssub.s32 %s23, %s30
      %s37 = sor.u32 %s35, %s36
      %p38 = scmp.eq.s32.totalorder %s37, 0
      %s40 = sadd.s32 %s39, 1
      %s41 = scalar_select %p38, %s39, %s40
      %p44 = pneg %p38
      %p45 = scmp.eq.s32.totalorder %s15, 3
      %p46 = por %p44, %p45
      %p47 = scmp.ne.s32.totalorder %s39, %s42
      %p48 = scmp.eq.s32.totalorder %s15, 0
      %p49 = por %p47, %p48
      %p50 = scmp.ne.s32.totalorder %s39, %s42
      %p51 = scmp.eq.s32.totalorder %s20, 3
      %p52 = por %p50, %p51
      %p53 = scmp.ne.s32.totalorder %s42, %s43
      %p54 = scmp.eq.s32.totalorder %s20, 0
      %p55 = por %p53, %p54
      %p56 = scmp.ne.s32.totalorder %s42, %s43
      %p57 = scmp.eq.s32.totalorder %s21, 3
      %p58 = por %p56, %p57
      %p60 = scmp.ne.s32.totalorder %s43, %s59
      %p61 = scmp.eq.s32.totalorder %s21, 0
      %p62 = por %p60, %p61
      %s64 = sadd.s32 %s63, 1
      %p67 = scmp.eq.s32.totalorder %s15, 3
      %p68 = scmp.ne.s32.totalorder %s63, %s65
      %p69 = scmp.eq.s32.totalorder %s15, 0
      %p70 = por %p68, %p69
      %p71 = scmp.ne.s32.totalorder %s63, %s65
      %p72 = scmp.eq.s32.totalorder %s20, 3
      %p73 = por %p71, %p72
      %p74 = scmp.ne.s32.totalorder %s65, %s66
      %p75 = scmp.eq.s32.totalorder %s20, 0
      %p76 = por %p74, %p75
      %p77 = scmp.ne.s32.totalorder %s65, %s66
      %p78 = scmp.eq.s32.totalorder %s21, 3
      %p79 = por %p77, %p78
      %p81 = scmp.ne.s32.totalorder %s66, %s80
      %p82 = scmp.eq.s32.totalorder %s21, 0
      %p83 = por %p81, %p82
      %s84 = ssub.s32 %s22, %s34
      %s85 = ssub.s32 %s23, %s30
      %s86 = sor.u32 %s84, %s85
      %p87 = scmp.eq.s32.totalorder %s86, 0
      %s89 = sadd.s32 %s88, 1
      %s90 = scalar_select %p87, %s88, %s89
      %p93 = pneg %p87
      %p94 = scmp.eq.s32.totalorder %s15, 3
      %p95 = por %p93, %p94
      %p96 = scmp.ne.s32.totalorder %s88, %s91
      %p97 = scmp.eq.s32.totalorder %s15, 0
      %p98 = por %p96, %p97
      %p99 = scmp.ne.s32.totalorder %s88, %s91
      %p100 = scmp.eq.s32.totalorder %s20, 3
      %p101 = por %p99, %p100
      %p102 = scmp.ne.s32.totalorder %s91, %s92
      %p103 = scmp.eq.s32.totalorder %s20, 0
      %p104 = por %p102, %p103
      %p105 = scmp.ne.s32.totalorder %s91, %s92
      %p106 = scmp.eq.s32.totalorder %s21, 3
      %p107 = por %p105, %p106
      %p109 = scmp.ne.s32.totalorder %s92, %s108
      %p110 = scmp.eq.s32.totalorder %s21, 0
      %p111 = por %p109, %p110
      %p112 = scmp.le.s32.totalorder 1, %s15
      %p113 = scmp.lt.s32.totalorder %s15, 5
      %p114 = pnand %p112, %p113
      %p115 = pneg %p114
      // Predicated region
      $region9: #{tpu_custom_call.1} parent=5 // pred_check
        _
      $region10: #{tpu_custom_call.1} parent=5 // pred_check_branch
        %117 = sbr.rel (%p114) target = $region12
      $region11: #{tpu_custom_call.1} parent=5 // pred_region
        %s118 = ssub.s32 %s15, 1
        // Predicated region
        $region13: #{tpu_custom_call.1} parent=11 // pred_check
          %p119 = pneg %p76
        $region14: #{tpu_custom_call.1} parent=11 // pred_check_branch
          %121 = sbr.rel (%p119) target = $region16
        $region15: #{tpu_custom_call.1} parent=11 // pred_region
          %s123 = ssub.s32 32768, 32768
          %124 = vsyncadd [#allocation6], %s123
          %s125 = sshll.u32 [#allocation5], 4
          %s126 = int_to_ptr.vmem [resolvable:$true] %s125
          %131 = dma.hbm_to_vmem [thread:$0]  %s1, 32768, %s126, [#allocation6], 1024, 1024, 64
        $region16: #{tpu_custom_call.1} parent=11 // pred_fallthru
          _
      $region12: #{tpu_custom_call.1} parent=5 // pred_fallthru
        _
      %p132 = scmp.lt.s32.totalorder %s15, 4
      // Predicated region
      $region17: #{tpu_custom_call.1} parent=5 // pred_check
        %p133 = pneg %p132
      $region18: #{tpu_custom_call.1} parent=5 // pred_check_branch
        %135 = sbr.rel (%p133) target = $region20
      $region19: #{tpu_custom_call.1} parent=5 // pred_region
        // Predicated region
        $region21: #{tpu_custom_call.1} parent=19 // pred_check
          %p136 = pneg %p49
        $region22: #{tpu_custom_call.1} parent=19 // pred_check_branch
          %138 = sbr.rel (%p136) target = $region24
        $region23: #{tpu_custom_call.1} parent=19 // pred_region
          %s139 = sand.u32 %s39, 1
          %s140 = scalar_lea.sflag [#allocation3], %s139
          %s141 = sand.u32 %s39, 1
          %s142 = smul.addr %s141, 1024
          %s143 = scalar_lea.vmem [#allocation2], %s142
          %s144 = smul.u32 16, %s23
          %s146 = ssub.s32 16384, 16384
          %147 = vsyncadd %s140, %s146
          %s148 = smul.addr %s144, 8
          %s149 = smul.addr %s22, 256
          %s150 = sadd.s32 %s148, %s149
          %s151 = smul.addr %s150, 128
          %s152 = scalar_lea.hbm %s0, %s151
          %s153 = sshll.u32 %s143, 4
          %s154 = int_to_ptr.vmem [resolvable:$true] %s153
          %159 = dma.hbm_to_vmem [thread:$0]  %s152, 16384, %s154, %s140, 1024, 1024, 64
        $region24: #{tpu_custom_call.1} parent=19 // pred_fallthru
          _
      $region20: #{tpu_custom_call.1} parent=5 // pred_fallthru
        _
      %p160 = scmp.le.s32.totalorder 1, %s15
      %p161 = scmp.lt.s32.totalorder %s15, 5
      %p162 = pnand %p160, %p161
      %p163 = pneg %p162
      // Predicated region
      $region25: #{tpu_custom_call.1} parent=5 // pred_check
        _
      $region26: #{tpu_custom_call.1} parent=5 // pred_check_branch
        %165 = sbr.rel (%p162) target = $region28
      $region27: #{tpu_custom_call.1} parent=5 // pred_region
        %s166 = ssub.s32 %s15, 1
        %s167 = sand.u32 %s42, 1
        %s168 = scalar_lea.sflag [#allocation3], %s167
        %s169 = sand.u32 %s42, 1
        %s170 = smul.addr %s169, 1024
        %s171 = scalar_lea.vmem [#allocation2], %s170
        // Predicated region
        $region29: #{tpu_custom_call.1} parent=27 // pred_check
          %p172 = pneg %p55
        $region30: #{tpu_custom_call.1} parent=27 // pred_check_branch
          %174 = sbr.rel (%p172) target = $region32
        $region31: #{tpu_custom_call.1} parent=27 // pred_region
          %175 = dma.done %s168, 16384
        $region32: #{tpu_custom_call.1} parent=27 // pred_fallthru
          _
        // Predicated region
        $region33: #{tpu_custom_call.1} parent=27 // pred_check
          %p176 = pneg %p76
        $region34: #{tpu_custom_call.1} parent=27 // pred_check_branch
          %178 = sbr.rel (%p176) target = $region36
        $region35: #{tpu_custom_call.1} parent=27 // pred_region
          %179 = dma.done [#allocation6], 32768
        $region36: #{tpu_custom_call.1} parent=27 // pred_fallthru
          _
        %s180 = sand.u32 %s42, 1
        %s181 = scalar_lea.sflag [#allocation3], %s180
        %s182 = sand.u32 %s42, 1
        %s183 = smul.addr %s182, 1024
        %s184 = scalar_lea.vmem [#allocation2], %s183
        %p185 = pneg %p55
        %p186 = pneg %p52
        %p187 = pneg %p76
        %p188 = pneg %p73
        %p189 = pneg %p104
        %p190 = pneg %p101
        %s191 = sand.u32 %s91, 1
        %s192 = scalar_lea.sflag [#allocation4], %s191
        %s193 = sand.u32 %s91, 1
        %s194 = smul.addr %s193, 1024
        %s195 = scalar_lea.vmem [#allocation7], %s194
        %s196 = smul.u32 16, %s25
        %s197 = smul.u32 16, %s25
        %s198 = smul.u32 %s25, 128
        %s199 = sshra.s32 %s198, 3
        %s200 = sand.u32 %s198, 7
        %s201 = smul.u32 %s199, 8
        %s202 = smul.addr %s201, 8
        %s203 = scalar_lea.vmem [#allocation5], %s202
        %v204 = vld [vmem:[%s203] sm:$0xff]
        %v205 = vld [vmem:[%s203 + $0x8] sm:$0xff]
        %v206 = vld [vmem:[%s203 + $0x10] sm:$0xff]
        %v207 = vld [vmem:[%s203 + $0x18] sm:$0xff]
        %v208 = vld [vmem:[%s203 + $0x20] sm:$0xff]
        %v209 = vld [vmem:[%s203 + $0x28] sm:$0xff]
        %v210 = vld [vmem:[%s203 + $0x30] sm:$0xff]
        %v211 = vld [vmem:[%s203 + $0x38] sm:$0xff]
        %v212 = vld [vmem:[%s203 + $0x40] sm:$0xff]
        %v213 = vld [vmem:[%s203 + $0x48] sm:$0xff]
        %v214 = vld [vmem:[%s203 + $0x50] sm:$0xff]
        %v215 = vld [vmem:[%s203 + $0x58] sm:$0xff]
        %v216 = vld [vmem:[%s203 + $0x60] sm:$0xff]
        %v217 = vld [vmem:[%s203 + $0x68] sm:$0xff]
        %v218 = vld [vmem:[%s203 + $0x70] sm:$0xff]
        %v219 = vld [vmem:[%s203 + $0x78] sm:$0xff]
        %v220 = vld [vmem:[%s203 + $0x80] sm:$0xff]
        %v221 = vld [vmem:[%s203 + $0x88] sm:$0xff]
        %v222 = vld [vmem:[%s203 + $0x90] sm:$0xff]
        %v223 = vld [vmem:[%s203 + $0x98] sm:$0xff]
        %v224 = vld [vmem:[%s203 + $0xa0] sm:$0xff]
        %v225 = vld [vmem:[%s203 + $0xa8] sm:$0xff]
        %v226 = vld [vmem:[%s203 + $0xb0] sm:$0xff]
        %v227 = vld [vmem:[%s203 + $0xb8] sm:$0xff]
        %v228 = vld [vmem:[%s203 + $0xc0] sm:$0xff]
        %v229 = vld [vmem:[%s203 + $0xc8] sm:$0xff]
        %v230 = vld [vmem:[%s203 + $0xd0] sm:$0xff]
        %v231 = vld [vmem:[%s203 + $0xd8] sm:$0xff]
        %v232 = vld [vmem:[%s203 + $0xe0] sm:$0xff]
        %v233 = vld [vmem:[%s203 + $0xe8] sm:$0xff]
        %v234 = vld [vmem:[%s203 + $0xf0] sm:$0xff]
        %v235 = vld [vmem:[%s203 + $0xf8] sm:$0xff]
        %v236 = vld [vmem:[%s203 + $0x100] sm:$0xff]
        %v237 = vld [vmem:[%s203 + $0x108] sm:$0xff]
        %v238 = vld [vmem:[%s203 + $0x110] sm:$0xff]
        %v239 = vld [vmem:[%s203 + $0x118] sm:$0xff]
        %v240 = vld [vmem:[%s203 + $0x120] sm:$0xff]
        %v241 = vld [vmem:[%s203 + $0x128] sm:$0xff]
        %v242 = vld [vmem:[%s203 + $0x130] sm:$0xff]
        %v243 = vld [vmem:[%s203 + $0x138] sm:$0xff]
        %v244 = vld [vmem:[%s203 + $0x140] sm:$0xff]
        %v245 = vld [vmem:[%s203 + $0x148] sm:$0xff]
        %v246 = vld [vmem:[%s203 + $0x150] sm:$0xff]
        %v247 = vld [vmem:[%s203 + $0x158] sm:$0xff]
        %v248 = vld [vmem:[%s203 + $0x160] sm:$0xff]
        %v249 = vld [vmem:[%s203 + $0x168] sm:$0xff]
        %v250 = vld [vmem:[%s203 + $0x170] sm:$0xff]
        %v251 = vld [vmem:[%s203 + $0x178] sm:$0xff]
        %v252 = vld [vmem:[%s203 + $0x180] sm:$0xff]
        %v253 = vld [vmem:[%s203 + $0x188] sm:$0xff]
        %v254 = vld [vmem:[%s203 + $0x190] sm:$0xff]
        %v255 = vld [vmem:[%s203 + $0x198] sm:$0xff]
        %v256 = vld [vmem:[%s203 + $0x1a0] sm:$0xff]
        %v257 = vld [vmem:[%s203 + $0x1a8] sm:$0xff]
        %v258 = vld [vmem:[%s203 + $0x1b0] sm:$0xff]
        %v259 = vld [vmem:[%s203 + $0x1b8] sm:$0xff]
        %v260 = vld [vmem:[%s203 + $0x1c0] sm:$0xff]
        %v261 = vld [vmem:[%s203 + $0x1c8] sm:$0xff]
        %v262 = vld [vmem:[%s203 + $0x1d0] sm:$0xff]
        %v263 = vld [vmem:[%s203 + $0x1d8] sm:$0xff]
        %v264 = vld [vmem:[%s203 + $0x1e0] sm:$0xff]
        %v265 = vld [vmem:[%s203 + $0x1e8] sm:$0xff]
        %v266 = vld [vmem:[%s203 + $0x1f0] sm:$0xff]
        %v267 = vld [vmem:[%s203 + $0x1f8] sm:$0xff]
        %v268 = vld [vmem:[%s203 + $0x200] sm:$0xff]
        %v269 = vld [vmem:[%s203 + $0x208] sm:$0xff]
        %v270 = vld [vmem:[%s203 + $0x210] sm:$0xff]
        %v271 = vld [vmem:[%s203 + $0x218] sm:$0xff]
        %v272 = vld [vmem:[%s203 + $0x220] sm:$0xff]
        %v273 = vld [vmem:[%s203 + $0x228] sm:$0xff]
        %v274 = vld [vmem:[%s203 + $0x230] sm:$0xff]
        %v275 = vld [vmem:[%s203 + $0x238] sm:$0xff]
        %v276 = vld [vmem:[%s203 + $0x240] sm:$0xff]
        %v277 = vld [vmem:[%s203 + $0x248] sm:$0xff]
        %v278 = vld [vmem:[%s203 + $0x250] sm:$0xff]
        %v279 = vld [vmem:[%s203 + $0x258] sm:$0xff]
        %v280 = vld [vmem:[%s203 + $0x260] sm:$0xff]
        %v281 = vld [vmem:[%s203 + $0x268] sm:$0xff]
        %v282 = vld [vmem:[%s203 + $0x270] sm:$0xff]
        %v283 = vld [vmem:[%s203 + $0x278] sm:$0xff]
        %v284 = vld [vmem:[%s203 + $0x280] sm:$0xff]
        %v285 = vld [vmem:[%s203 + $0x288] sm:$0xff]
        %v286 = vld [vmem:[%s203 + $0x290] sm:$0xff]
        %v287 = vld [vmem:[%s203 + $0x298] sm:$0xff]
        %v288 = vld [vmem:[%s203 + $0x2a0] sm:$0xff]
        %v289 = vld [vmem:[%s203 + $0x2a8] sm:$0xff]
        %v290 = vld [vmem:[%s203 + $0x2b0] sm:$0xff]
        %v291 = vld [vmem:[%s203 + $0x2b8] sm:$0xff]
        %v292 = vld [vmem:[%s203 + $0x2c0] sm:$0xff]
        %v293 = vld [vmem:[%s203 + $0x2c8] sm:$0xff]
        %v294 = vld [vmem:[%s203 + $0x2d0] sm:$0xff]
        %v295 = vld [vmem:[%s203 + $0x2d8] sm:$0xff]
        %v296 = vld [vmem:[%s203 + $0x2e0] sm:$0xff]
        %v297 = vld [vmem:[%s203 + $0x2e8] sm:$0xff]
        %v298 = vld [vmem:[%s203 + $0x2f0] sm:$0xff]
        %v299 = vld [vmem:[%s203 + $0x2f8] sm:$0xff]
        %v300 = vld [vmem:[%s203 + $0x300] sm:$0xff]
        %v301 = vld [vmem:[%s203 + $0x308] sm:$0xff]
        %v302 = vld [vmem:[%s203 + $0x310] sm:$0xff]
        %v303 = vld [vmem:[%s203 + $0x318] sm:$0xff]
        %v304 = vld [vmem:[%s203 + $0x320] sm:$0xff]
        %v305 = vld [vmem:[%s203 + $0x328] sm:$0xff]
        %v306 = vld [vmem:[%s203 + $0x330] sm:$0xff]
        %v307 = vld [vmem:[%s203 + $0x338] sm:$0xff]
        %v308 = vld [vmem:[%s203 + $0x340] sm:$0xff]
        %v309 = vld [vmem:[%s203 + $0x348] sm:$0xff]
        %v310 = vld [vmem:[%s203 + $0x350] sm:$0xff]
        %v311 = vld [vmem:[%s203 + $0x358] sm:$0xff]
        %v312 = vld [vmem:[%s203 + $0x360] sm:$0xff]
        %v313 = vld [vmem:[%s203 + $0x368] sm:$0xff]
        %v314 = vld [vmem:[%s203 + $0x370] sm:$0xff]
        %v315 = vld [vmem:[%s203 + $0x378] sm:$0xff]
        %v316 = vld [vmem:[%s203 + $0x380] sm:$0xff]
        %v317 = vld [vmem:[%s203 + $0x388] sm:$0xff]
        %v318 = vld [vmem:[%s203 + $0x390] sm:$0xff]
        %v319 = vld [vmem:[%s203 + $0x398] sm:$0xff]
        %v320 = vld [vmem:[%s203 + $0x3a0] sm:$0xff]
        %v321 = vld [vmem:[%s203 + $0x3a8] sm:$0xff]
        %v322 = vld [vmem:[%s203 + $0x3b0] sm:$0xff]
        %v323 = vld [vmem:[%s203 + $0x3b8] sm:$0xff]
        %v324 = vld [vmem:[%s203 + $0x3c0] sm:$0xff]
        %v325 = vld [vmem:[%s203 + $0x3c8] sm:$0xff]
        %v326 = vld [vmem:[%s203 + $0x3d0] sm:$0xff]
        %v327 = vld [vmem:[%s203 + $0x3d8] sm:$0xff]
        %v328 = vld [vmem:[%s203 + $0x3e0] sm:$0xff]
        %v329 = vld [vmem:[%s203 + $0x3e8] sm:$0xff]
        %v330 = vld [vmem:[%s203 + $0x3f0] sm:$0xff]
        %v331 = vld [vmem:[%s203 + $0x3f8] sm:$0xff]
        %v332 = vld [vmem:[%s171] sm:$0xff]
        %v333 = vld [vmem:[%s171 + $0x8] sm:$0xff]
        %v334 = vld [vmem:[%s171 + $0x10] sm:$0xff]
        %v335 = vld [vmem:[%s171 + $0x18] sm:$0xff]
        %v336 = vld [vmem:[%s171 + $0x20] sm:$0xff]
        %v337 = vld [vmem:[%s171 + $0x28] sm:$0xff]
        %v338 = vld [vmem:[%s171 + $0x30] sm:$0xff]
        %v339 = vld [vmem:[%s171 + $0x38] sm:$0xff]
        %v340 = vld [vmem:[%s171 + $0x40] sm:$0xff]
        %v341 = vld [vmem:[%s171 + $0x48] sm:$0xff]
        %v342 = vld [vmem:[%s171 + $0x50] sm:$0xff]
        %v343 = vld [vmem:[%s171 + $0x58] sm:$0xff]
        %v344 = vld [vmem:[%s171 + $0x60] sm:$0xff]
        %v345 = vld [vmem:[%s171 + $0x68] sm:$0xff]
        %v346 = vld [vmem:[%s171 + $0x70] sm:$0xff]
        %v347 = vld [vmem:[%s171 + $0x78] sm:$0xff]
        %v348 = vld [vmem:[%s171 + $0x80] sm:$0xff]
        %v349 = vld [vmem:[%s171 + $0x88] sm:$0xff]
        %v350 = vld [vmem:[%s171 + $0x90] sm:$0xff]
        %v351 = vld [vmem:[%s171 + $0x98] sm:$0xff]
        %v352 = vld [vmem:[%s171 + $0xa0] sm:$0xff]
        %v353 = vld [vmem:[%s171 + $0xa8] sm:$0xff]
        %v354 = vld [vmem:[%s171 + $0xb0] sm:$0xff]
        %v355 = vld [vmem:[%s171 + $0xb8] sm:$0xff]
        %v356 = vld [vmem:[%s171 + $0xc0] sm:$0xff]
        %v357 = vld [vmem:[%s171 + $0xc8] sm:$0xff]
        %v358 = vld [vmem:[%s171 + $0xd0] sm:$0xff]
        %v359 = vld [vmem:[%s171 + $0xd8] sm:$0xff]
        %v360 = vld [vmem:[%s171 + $0xe0] sm:$0xff]
        %v361 = vld [vmem:[%s171 + $0xe8] sm:$0xff]
        %v362 = vld [vmem:[%s171 + $0xf0] sm:$0xff]
        %v363 = vld [vmem:[%s171 + $0xf8] sm:$0xff]
        %v364 = vld [vmem:[%s171 + $0x100] sm:$0xff]
        %v365 = vld [vmem:[%s171 + $0x108] sm:$0xff]
        %v366 = vld [vmem:[%s171 + $0x110] sm:$0xff]
        %v367 = vld [vmem:[%s171 + $0x118] sm:$0xff]
        %v368 = vld [vmem:[%s171 + $0x120] sm:$0xff]
        %v369 = vld [vmem:[%s171 + $0x128] sm:$0xff]
        %v370 = vld [vmem:[%s171 + $0x130] sm:$0xff]
        %v371 = vld [vmem:[%s171 + $0x138] sm:$0xff]
        %v372 = vld [vmem:[%s171 + $0x140] sm:$0xff]
        %v373 = vld [vmem:[%s171 + $0x148] sm:$0xff]
        %v374 = vld [vmem:[%s171 + $0x150] sm:$0xff]
        %v375 = vld [vmem:[%s171 + $0x158] sm:$0xff]
        %v376 = vld [vmem:[%s171 + $0x160] sm:$0xff]
        %v377 = vld [vmem:[%s171 + $0x168] sm:$0xff]
        %v378 = vld [vmem:[%s171 + $0x170] sm:$0xff]
        %v379 = vld [vmem:[%s171 + $0x178] sm:$0xff]
        %v380 = vld [vmem:[%s171 + $0x180] sm:$0xff]
        %v381 = vld [vmem:[%s171 + $0x188] sm:$0xff]
        %v382 = vld [vmem:[%s171 + $0x190] sm:$0xff]
        %v383 = vld [vmem:[%s171 + $0x198] sm:$0xff]
        %v384 = vld [vmem:[%s171 + $0x1a0] sm:$0xff]
        %v385 = vld [vmem:[%s171 + $0x1a8] sm:$0xff]
        %v386 = vld [vmem:[%s171 + $0x1b0] sm:$0xff]
        %v387 = vld [vmem:[%s171 + $0x1b8] sm:$0xff]
        %v388 = vld [vmem:[%s171 + $0x1c0] sm:$0xff]
        %v389 = vld [vmem:[%s171 + $0x1c8] sm:$0xff]
        %v390 = vld [vmem:[%s171 + $0x1d0] sm:$0xff]
        %v391 = vld [vmem:[%s171 + $0x1d8] sm:$0xff]
        %v392 = vld [vmem:[%s171 + $0x1e0] sm:$0xff]
        %v393 = vld [vmem:[%s171 + $0x1e8] sm:$0xff]
        %v394 = vld [vmem:[%s171 + $0x1f0] sm:$0xff]
        %v395 = vld [vmem:[%s171 + $0x1f8] sm:$0xff]
        %v396 = vld [vmem:[%s171 + $0x200] sm:$0xff]
        %v397 = vld [vmem:[%s171 + $0x208] sm:$0xff]
        %v398 = vld [vmem:[%s171 + $0x210] sm:$0xff]
        %v399 = vld [vmem:[%s171 + $0x218] sm:$0xff]
        %v400 = vld [vmem:[%s171 + $0x220] sm:$0xff]
        %v401 = vld [vmem:[%s171 + $0x228] sm:$0xff]
        %v402 = vld [vmem:[%s171 + $0x230] sm:$0xff]
        %v403 = vld [vmem:[%s171 + $0x238] sm:$0xff]
        %v404 = vld [vmem:[%s171 + $0x240] sm:$0xff]
        %v405 = vld [vmem:[%s171 + $0x248] sm:$0xff]
        %v406 = vld [vmem:[%s171 + $0x250] sm:$0xff]
        %v407 = vld [vmem:[%s171 + $0x258] sm:$0xff]
        %v408 = vld [vmem:[%s171 + $0x260] sm:$0xff]
        %v409 = vld [vmem:[%s171 + $0x268] sm:$0xff]
        %v410 = vld [vmem:[%s171 + $0x270] sm:$0xff]
        %v411 = vld [vmem:[%s171 + $0x278] sm:$0xff]
        %v412 = vld [vmem:[%s171 + $0x280] sm:$0xff]
        %v413 = vld [vmem:[%s171 + $0x288] sm:$0xff]
        %v414 = vld [vmem:[%s171 + $0x290] sm:$0xff]
        %v415 = vld [vmem:[%s171 + $0x298] sm:$0xff]
        %v416 = vld [vmem:[%s171 + $0x2a0] sm:$0xff]
        %v417 = vld [vmem:[%s171 + $0x2a8] sm:$0xff]
        %v418 = vld [vmem:[%s171 + $0x2b0] sm:$0xff]
        %v419 = vld [vmem:[%s171 + $0x2b8] sm:$0xff]
        %v420 = vld [vmem:[%s171 + $0x2c0] sm:$0xff]
        %v421 = vld [vmem:[%s171 + $0x2c8] sm:$0xff]
        %v422 = vld [vmem:[%s171 + $0x2d0] sm:$0xff]
        %v423 = vld [vmem:[%s171 + $0x2d8] sm:$0xff]
        %v424 = vld [vmem:[%s171 + $0x2e0] sm:$0xff]
        %v425 = vld [vmem:[%s171 + $0x2e8] sm:$0xff]
        %v426 = vld [vmem:[%s171 + $0x2f0] sm:$0xff]
        %v427 = vld [vmem:[%s171 + $0x2f8] sm:$0xff]
        %v428 = vld [vmem:[%s171 + $0x300] sm:$0xff]
        %v429 = vld [vmem:[%s171 + $0x308] sm:$0xff]
        %v430 = vld [vmem:[%s171 + $0x310] sm:$0xff]
        %v431 = vld [vmem:[%s171 + $0x318] sm:$0xff]
        %v432 = vld [vmem:[%s171 + $0x320] sm:$0xff]
        %v433 = vld [vmem:[%s171 + $0x328] sm:$0xff]
        %v434 = vld [vmem:[%s171 + $0x330] sm:$0xff]
        %v435 = vld [vmem:[%s171 + $0x338] sm:$0xff]
        %v436 = vld [vmem:[%s171 + $0x340] sm:$0xff]
        %v437 = vld [vmem:[%s171 + $0x348] sm:$0xff]
        %v438 = vld [vmem:[%s171 + $0x350] sm:$0xff]
        %v439 = vld [vmem:[%s171 + $0x358] sm:$0xff]
        %v440 = vld [vmem:[%s171 + $0x360] sm:$0xff]
        %v441 = vld [vmem:[%s171 + $0x368] sm:$0xff]
        %v442 = vld [vmem:[%s171 + $0x370] sm:$0xff]
        %v443 = vld [vmem:[%s171 + $0x378] sm:$0xff]
        %v444 = vld [vmem:[%s171 + $0x380] sm:$0xff]
        %v445 = vld [vmem:[%s171 + $0x388] sm:$0xff]
        %v446 = vld [vmem:[%s171 + $0x390] sm:$0xff]
        %v447 = vld [vmem:[%s171 + $0x398] sm:$0xff]
        %v448 = vld [vmem:[%s171 + $0x3a0] sm:$0xff]
        %v449 = vld [vmem:[%s171 + $0x3a8] sm:$0xff]
        %v450 = vld [vmem:[%s171 + $0x3b0] sm:$0xff]
        %v451 = vld [vmem:[%s171 + $0x3b8] sm:$0xff]
        %v452 = vld [vmem:[%s171 + $0x3c0] sm:$0xff]
        %v453 = vld [vmem:[%s171 + $0x3c8] sm:$0xff]
        %v454 = vld [vmem:[%s171 + $0x3d0] sm:$0xff]
        %v455 = vld [vmem:[%s171 + $0x3d8] sm:$0xff]
        %v456 = vld [vmem:[%s171 + $0x3e0] sm:$0xff]
        %v457 = vld [vmem:[%s171 + $0x3e8] sm:$0xff]
        %v458 = vld [vmem:[%s171 + $0x3f0] sm:$0xff]
        %v459 = vld [vmem:[%s171 + $0x3f8] sm:$0xff]
        %v460 = vadd.f32 %v332, %v204
        %v461 = vadd.f32 %v333, %v205
        %v462 = vadd.f32 %v334, %v206
        %v463 = vadd.f32 %v335, %v207
        %v464 = vadd.f32 %v336, %v208
        %v465 = vadd.f32 %v337, %v209
        %v466 = vadd.f32 %v338, %v210
        %v467 = vadd.f32 %v339, %v211
        %v468 = vadd.f32 %v340, %v212
        %v469 = vadd.f32 %v341, %v213
        %v470 = vadd.f32 %v342, %v214
        %v471 = vadd.f32 %v343, %v215
        %v472 = vadd.f32 %v344, %v216
        %v473 = vadd.f32 %v345, %v217
        %v474 = vadd.f32 %v346, %v218
        %v475 = vadd.f32 %v347, %v219
        %v476 = vadd.f32 %v348, %v220
        %v477 = vadd.f32 %v349, %v221
        %v478 = vadd.f32 %v350, %v222
        %v479 = vadd.f32 %v351, %v223
        %v480 = vadd.f32 %v352, %v224
        %v481 = vadd.f32 %v353, %v225
        %v482 = vadd.f32 %v354, %v226
        %v483 = vadd.f32 %v355, %v227
        %v484 = vadd.f32 %v356, %v228
        %v485 = vadd.f32 %v357, %v229
        %v486 = vadd.f32 %v358, %v230
        %v487 = vadd.f32 %v359, %v231
        %v488 = vadd.f32 %v360, %v232
        %v489 = vadd.f32 %v361, %v233
        %v490 = vadd.f32 %v362, %v234
        %v491 = vadd.f32 %v363, %v235
        %v492 = vadd.f32 %v364, %v236
        %v493 = vadd.f32 %v365, %v237
        %v494 = vadd.f32 %v366, %v238
        %v495 = vadd.f32 %v367, %v239
        %v496 = vadd.f32 %v368, %v240
        %v497 = vadd.f32 %v369, %v241
        %v498 = vadd.f32 %v370, %v242
        %v499 = vadd.f32 %v371, %v243
        %v500 = vadd.f32 %v372, %v244
        %v501 = vadd.f32 %v373, %v245
        %v502 = vadd.f32 %v374, %v246
        %v503 = vadd.f32 %v375, %v247
        %v504 = vadd.f32 %v376, %v248
        %v505 = vadd.f32 %v377, %v249
        %v506 = vadd.f32 %v378, %v250
        %v507 = vadd.f32 %v379, %v251
        %v508 = vadd.f32 %v380, %v252
        %v509 = vadd.f32 %v381, %v253
        %v510 = vadd.f32 %v382, %v254
        %v511 = vadd.f32 %v383, %v255
        %v512 = vadd.f32 %v384, %v256
        %v513 = vadd.f32 %v385, %v257
        %v514 = vadd.f32 %v386, %v258
        %v515 = vadd.f32 %v387, %v259
        %v516 = vadd.f32 %v388, %v260
        %v517 = vadd.f32 %v389, %v261
        %v518 = vadd.f32 %v390, %v262
        %v519 = vadd.f32 %v391, %v263
        %v520 = vadd.f32 %v392, %v264
        %v521 = vadd.f32 %v393, %v265
        %v522 = vadd.f32 %v394, %v266
        %v523 = vadd.f32 %v395, %v267
        %v524 = vadd.f32 %v396, %v268
        %v525 = vadd.f32 %v397, %v269
        %v526 = vadd.f32 %v398, %v270
        %v527 = vadd.f32 %v399, %v271
        %v528 = vadd.f32 %v400, %v272
        %v529 = vadd.f32 %v401, %v273
        %v530 = vadd.f32 %v402, %v274
        %v531 = vadd.f32 %v403, %v275
        %v532 = vadd.f32 %v404, %v276
        %v533 = vadd.f32 %v405, %v277
        %v534 = vadd.f32 %v406, %v278
        %v535 = vadd.f32 %v407, %v279
        %v536 = vadd.f32 %v408, %v280
        %v537 = vadd.f32 %v409, %v281
        %v538 = vadd.f32 %v410, %v282
        %v539 = vadd.f32 %v411, %v283
        %v540 = vadd.f32 %v412, %v284
        %v541 = vadd.f32 %v413, %v285
        %v542 = vadd.f32 %v414, %v286
        %v543 = vadd.f32 %v415, %v287
        %v544 = vadd.f32 %v416, %v288
        %v545 = vadd.f32 %v417, %v289
        %v546 = vadd.f32 %v418, %v290
        %v547 = vadd.f32 %v419, %v291
        %v548 = vadd.f32 %v420, %v292
        %v549 = vadd.f32 %v421, %v293
        %v550 = vadd.f32 %v422, %v294
        %v551 = vadd.f32 %v423, %v295
        %v552 = vadd.f32 %v424, %v296
        %v553 = vadd.f32 %v425, %v297
        %v554 = vadd.f32 %v426, %v298
        %v555 = vadd.f32 %v427, %v299
        %v556 = vadd.f32 %v428, %v300
        %v557 = vadd.f32 %v429, %v301
        %v558 = vadd.f32 %v430, %v302
        %v559 = vadd.f32 %v431, %v303
        %v560 = vadd.f32 %v432, %v304
        %v561 = vadd.f32 %v433, %v305
        %v562 = vadd.f32 %v434, %v306
        %v563 = vadd.f32 %v435, %v307
        %v564 = vadd.f32 %v436, %v308
        %v565 = vadd.f32 %v437, %v309
        %v566 = vadd.f32 %v438, %v310
        %v567 = vadd.f32 %v439, %v311
        %v568 = vadd.f32 %v440, %v312
        %v569 = vadd.f32 %v441, %v313
        %v570 = vadd.f32 %v442, %v314
        %v571 = vadd.f32 %v443, %v315
        %v572 = vadd.f32 %v444, %v316
        %v573 = vadd.f32 %v445, %v317
        %v574 = vadd.f32 %v446, %v318
        %v575 = vadd.f32 %v447, %v319
        %v576 = vadd.f32 %v448, %v320
        %v577 = vadd.f32 %v449, %v321
        %v578 = vadd.f32 %v450, %v322
        %v579 = vadd.f32 %v451, %v323
        %v580 = vadd.f32 %v452, %v324
        %v581 = vadd.f32 %v453, %v325
        %v582 = vadd.f32 %v454, %v326
        %v583 = vadd.f32 %v455, %v327
        %v584 = vadd.f32 %v456, %v328
        %v585 = vadd.f32 %v457, %v329
        %v586 = vadd.f32 %v458, %v330
        %v587 = vadd.f32 %v459, %v331
        %588 = vst [vmem:[%s195] sm:$0xff] %v460
        %589 = vst [vmem:[%s195 + $0x8] sm:$0xff] %v461
        %590 = vst [vmem:[%s195 + $0x10] sm:$0xff] %v462
        %591 = vst [vmem:[%s195 + $0x18] sm:$0xff] %v463
        %592 = vst [vmem:[%s195 + $0x20] sm:$0xff] %v464
        %593 = vst [vmem:[%s195 + $0x28] sm:$0xff] %v465
        %594 = vst [vmem:[%s195 + $0x30] sm:$0xff] %v466
        %595 = vst [vmem:[%s195 + $0x38] sm:$0xff] %v467
        %596 = vst [vmem:[%s195 + $0x40] sm:$0xff] %v468
        %597 = vst [vmem:[%s195 + $0x48] sm:$0xff] %v469
        %598 = vst [vmem:[%s195 + $0x50] sm:$0xff] %v470
        %599 = vst [vmem:[%s195 + $0x58] sm:$0xff] %v471
        %600 = vst [vmem:[%s195 + $0x60] sm:$0xff] %v472
        %601 = vst [vmem:[%s195 + $0x68] sm:$0xff] %v473
        %602 = vst [vmem:[%s195 + $0x70] sm:$0xff] %v474
        %603 = vst [vmem:[%s195 + $0x78] sm:$0xff] %v475
        %604 = vst [vmem:[%s195 + $0x80] sm:$0xff] %v476
        %605 = vst [vmem:[%s195 + $0x88] sm:$0xff] %v477
        %606 = vst [vmem:[%s195 + $0x90] sm:$0xff] %v478
        %607 = vst [vmem:[%s195 + $0x98] sm:$0xff] %v479
        %608 = vst [vmem:[%s195 + $0xa0] sm:$0xff] %v480
        %609 = vst [vmem:[%s195 + $0xa8] sm:$0xff] %v481
        %610 = vst [vmem:[%s195 + $0xb0] sm:$0xff] %v482
        %611 = vst [vmem:[%s195 + $0xb8] sm:$0xff] %v483
        %612 = vst [vmem:[%s195 + $0xc0] sm:$0xff] %v484
        %613 = vst [vmem:[%s195 + $0xc8] sm:$0xff] %v485
        %614 = vst [vmem:[%s195 + $0xd0] sm:$0xff] %v486
        %615 = vst [vmem:[%s195 + $0xd8] sm:$0xff] %v487
        %616 = vst [vmem:[%s195 + $0xe0] sm:$0xff] %v488
        %617 = vst [vmem:[%s195 + $0xe8] sm:$0xff] %v489
        %618 = vst [vmem:[%s195 + $0xf0] sm:$0xff] %v490
        %619 = vst [vmem:[%s195 + $0xf8] sm:$0xff] %v491
        %620 = vst [vmem:[%s195 + $0x100] sm:$0xff] %v492
        %621 = vst [vmem:[%s195 + $0x108] sm:$0xff] %v493
        %622 = vst [vmem:[%s195 + $0x110] sm:$0xff] %v494
        %623 = vst [vmem:[%s195 + $0x118] sm:$0xff] %v495
        %624 = vst [vmem:[%s195 + $0x120] sm:$0xff] %v496
        %625 = vst [vmem:[%s195 + $0x128] sm:$0xff] %v497
        %626 = vst [vmem:[%s195 + $0x130] sm:$0xff] %v498
        %627 = vst [vmem:[%s195 + $0x138] sm:$0xff] %v499
        %628 = vst [vmem:[%s195 + $0x140] sm:$0xff] %v500
        %629 = vst [vmem:[%s195 + $0x148] sm:$0xff] %v501
        %630 = vst [vmem:[%s195 + $0x150] sm:$0xff] %v502
        %631 = vst [vmem:[%s195 + $0x158] sm:$0xff] %v503
        %632 = vst [vmem:[%s195 + $0x160] sm:$0xff] %v504
        %633 = vst [vmem:[%s195 + $0x168] sm:$0xff] %v505
        %634 = vst [vmem:[%s195 + $0x170] sm:$0xff] %v506
        %635 = vst [vmem:[%s195 + $0x178] sm:$0xff] %v507
        %636 = vst [vmem:[%s195 + $0x180] sm:$0xff] %v508
        %637 = vst [vmem:[%s195 + $0x188] sm:$0xff] %v509
        %638 = vst [vmem:[%s195 + $0x190] sm:$0xff] %v510
        %639 = vst [vmem:[%s195 + $0x198] sm:$0xff] %v511
        %640 = vst [vmem:[%s195 + $0x1a0] sm:$0xff] %v512
        %641 = vst [vmem:[%s195 + $0x1a8] sm:$0xff] %v513
        %642 = vst [vmem:[%s195 + $0x1b0] sm:$0xff] %v514
        %643 = vst [vmem:[%s195 + $0x1b8] sm:$0xff] %v515
        %644 = vst [vmem:[%s195 + $0x1c0] sm:$0xff] %v516
        %645 = vst [vmem:[%s195 + $0x1c8] sm:$0xff] %v517
        %646 = vst [vmem:[%s195 + $0x1d0] sm:$0xff] %v518
        %647 = vst [vmem:[%s195 + $0x1d8] sm:$0xff] %v519
        %648 = vst [vmem:[%s195 + $0x1e0] sm:$0xff] %v520
        %649 = vst [vmem:[%s195 + $0x1e8] sm:$0xff] %v521
        %650 = vst [vmem:[%s195 + $0x1f0] sm:$0xff] %v522
        %651 = vst [vmem:[%s195 + $0x1f8] sm:$0xff] %v523
        %652 = vst [vmem:[%s195 + $0x200] sm:$0xff] %v524
        %653 = vst [vmem:[%s195 + $0x208] sm:$0xff] %v525
        %654 = vst [vmem:[%s195 + $0x210] sm:$0xff] %v526
        %655 = vst [vmem:[%s195 + $0x218] sm:$0xff] %v527
        %656 = vst [vmem:[%s195 + $0x220] sm:$0xff] %v528
        %657 = vst [vmem:[%s195 + $0x228] sm:$0xff] %v529
        %658 = vst [vmem:[%s195 + $0x230] sm:$0xff] %v530
        %659 = vst [vmem:[%s195 + $0x238] sm:$0xff] %v531
        %660 = vst [vmem:[%s195 + $0x240] sm:$0xff] %v532
        %661 = vst [vmem:[%s195 + $0x248] sm:$0xff] %v533
        %662 = vst [vmem:[%s195 + $0x250] sm:$0xff] %v534
        %663 = vst [vmem:[%s195 + $0x258] sm:$0xff] %v535
        %664 = vst [vmem:[%s195 + $0x260] sm:$0xff] %v536
        %665 = vst [vmem:[%s195 + $0x268] sm:$0xff] %v537
        %666 = vst [vmem:[%s195 + $0x270] sm:$0xff] %v538
        %667 = vst [vmem:[%s195 + $0x278] sm:$0xff] %v539
        %668 = vst [vmem:[%s195 + $0x280] sm:$0xff] %v540
        %669 = vst [vmem:[%s195 + $0x288] sm:$0xff] %v541
        %670 = vst [vmem:[%s195 + $0x290] sm:$0xff] %v542
        %671 = vst [vmem:[%s195 + $0x298] sm:$0xff] %v543
        %672 = vst [vmem:[%s195 + $0x2a0] sm:$0xff] %v544
        %673 = vst [vmem:[%s195 + $0x2a8] sm:$0xff] %v545
        %674 = vst [vmem:[%s195 + $0x2b0] sm:$0xff] %v546
        %675 = vst [vmem:[%s195 + $0x2b8] sm:$0xff] %v547
        %676 = vst [vmem:[%s195 + $0x2c0] sm:$0xff] %v548
        %677 = vst [vmem:[%s195 + $0x2c8] sm:$0xff] %v549
        %678 = vst [vmem:[%s195 + $0x2d0] sm:$0xff] %v550
        %679 = vst [vmem:[%s195 + $0x2d8] sm:$0xff] %v551
        %680 = vst [vmem:[%s195 + $0x2e0] sm:$0xff] %v552
        %681 = vst [vmem:[%s195 + $0x2e8] sm:$0xff] %v553
        %682 = vst [vmem:[%s195 + $0x2f0] sm:$0xff] %v554
        %683 = vst [vmem:[%s195 + $0x2f8] sm:$0xff] %v555
        %684 = vst [vmem:[%s195 + $0x300] sm:$0xff] %v556
        %685 = vst [vmem:[%s195 + $0x308] sm:$0xff] %v557
        %686 = vst [vmem:[%s195 + $0x310] sm:$0xff] %v558
        %687 = vst [vmem:[%s195 + $0x318] sm:$0xff] %v559
        %688 = vst [vmem:[%s195 + $0x320] sm:$0xff] %v560
        %689 = vst [vmem:[%s195 + $0x328] sm:$0xff] %v561
        %690 = vst [vmem:[%s195 + $0x330] sm:$0xff] %v562
        %691 = vst [vmem:[%s195 + $0x338] sm:$0xff] %v563
        %692 = vst [vmem:[%s195 + $0x340] sm:$0xff] %v564
        %693 = vst [vmem:[%s195 + $0x348] sm:$0xff] %v565
        %694 = vst [vmem:[%s195 + $0x350] sm:$0xff] %v566
        %695 = vst [vmem:[%s195 + $0x358] sm:$0xff] %v567
        %696 = vst [vmem:[%s195 + $0x360] sm:$0xff] %v568
        %697 = vst [vmem:[%s195 + $0x368] sm:$0xff] %v569
        %698 = vst [vmem:[%s195 + $0x370] sm:$0xff] %v570
        %699 = vst [vmem:[%s195 + $0x378] sm:$0xff] %v571
        %700 = vst [vmem:[%s195 + $0x380] sm:$0xff] %v572
        %701 = vst [vmem:[%s195 + $0x388] sm:$0xff] %v573
        %702 = vst [vmem:[%s195 + $0x390] sm:$0xff] %v574
        %703 = vst [vmem:[%s195 + $0x398] sm:$0xff] %v575
        %704 = vst [vmem:[%s195 + $0x3a0] sm:$0xff] %v576
        %705 = vst [vmem:[%s195 + $0x3a8] sm:$0xff] %v577
        %706 = vst [vmem:[%s195 + $0x3b0] sm:$0xff] %v578
        %707 = vst [vmem:[%s195 + $0x3b8] sm:$0xff] %v579
        %708 = vst [vmem:[%s195 + $0x3c0] sm:$0xff] %v580
        %709 = vst [vmem:[%s195 + $0x3c8] sm:$0xff] %v581
        %710 = vst [vmem:[%s195 + $0x3d0] sm:$0xff] %v582
        %711 = vst [vmem:[%s195 + $0x3d8] sm:$0xff] %v583
        %712 = vst [vmem:[%s195 + $0x3e0] sm:$0xff] %v584
        %713 = vst [vmem:[%s195 + $0x3e8] sm:$0xff] %v585
        %714 = vst [vmem:[%s195 + $0x3f0] sm:$0xff] %v586
        %715 = vst [vmem:[%s195 + $0x3f8] sm:$0xff] %v587
        %s716 = sand.u32 %s91, 1
        %s717 = scalar_lea.sflag [#allocation4], %s716
        %s718 = sand.u32 %s91, 1
        %s719 = smul.addr %s718, 1024
        %s720 = scalar_lea.vmem [#allocation7], %s719
        // Predicated region
        $region37: #{tpu_custom_call.1} parent=27 // pred_check
          %p721 = pneg %p101
        $region38: #{tpu_custom_call.1} parent=27 // pred_check_branch
          %723 = sbr.rel (%p721) target = $region40
        $region39: #{tpu_custom_call.1} parent=27 // pred_region
          %s724 = smul.u32 16, %s25
          %s726 = ssub.s32 16384, 16384
          %727 = vsyncadd %s717, %s726
          %s728 = smul.addr %s724, 8
          %s729 = smul.addr %s24, 256
          %s730 = sadd.s32 %s728, %s729
          %s731 = smul.addr %s730, 128
          %s732 = scalar_lea.hbm %s2, %s731
          %s733 = sshll.u32 %s720, 4
          %s734 = int_to_ptr.vmem [resolvable:$true] %s733
          %739 = dma.vmem_to_hbm [thread:$0]  %s734, 16384, %s732, %s717, 1024, 1024, 64
        $region40: #{tpu_custom_call.1} parent=27 // pred_fallthru
          _
      $region28: #{tpu_custom_call.1} parent=5 // pred_fallthru
        _
      %p740 = scmp.le.s32.totalorder 2, %s15
      // Predicated region
      $region41: #{tpu_custom_call.1} parent=5 // pred_check
        %p741 = pneg %p740
      $region42: #{tpu_custom_call.1} parent=5 // pred_check_branch
        %743 = sbr.rel (%p741) target = $region44
      $region43: #{tpu_custom_call.1} parent=5 // pred_region
        %s744 = ssub.s32 %s15, 2
        // Predicated region
        $region45: #{tpu_custom_call.1} parent=43 // pred_check
          %p745 = pneg %p107
        $region46: #{tpu_custom_call.1} parent=43 // pred_check_branch
          %747 = sbr.rel (%p745) target = $region48
        $region47: #{tpu_custom_call.1} parent=43 // pred_region
          %s748 = sand.u32 %s92, 1
          %s749 = scalar_lea.sflag [#allocation4], %s748
          %s750 = sand.u32 %s92, 1
          %s751 = smul.addr %s750, 1024
          %s752 = scalar_lea.vmem [#allocation7], %s751
          %753 = dma.done %s749, 16384
        $region48: #{tpu_custom_call.1} parent=43 // pred_fallthru
          _
      $region44: #{tpu_custom_call.1} parent=5 // pred_fallthru
        _
    $region6: #{tpu_custom_call.1} parent=1 // loop_footer
      %s19 = sadd.s32 1, %s15
    $region7: #{tpu_custom_call.1} parent=1 // loop_footer_branch
      %14 = sbr.rel target = $region3
    $region8: #{tpu_custom_call.1} parent=1 // loop_exit
      _
    %754 = vsyncpa [#allocation3], 1
    %s755 = scalar_lea.sflag [#allocation3], 1
    %756 = vsyncpa %s755, 1
    %757 = vsyncpa [#allocation6], 1
    %758 = vsyncpa [#allocation4], 1
    %s759 = scalar_lea.sflag [#allocation4], 1
    %760 = vsyncpa %s759, 1

</llo_original>
